<compile_context>
chip_gen: v7x
topology: tpu7x:2x2x1
jax: 0.10.0
libtpu: 0.0.40
codegen_flags: <defaults>
</compile_context>

<pallas_src>
import functools

import jax
import jax.numpy as jnp
from jax.experimental import pallas as pl
from jax.experimental.pallas import tpu as pltpu

LN_EPS = 1e-5  # PyTorch nn.LayerNorm default


def _round_up(x, m):
    return ((x + m - 1) // m) * m


def _proj_kernel(x_ref, w_ref, gb_ref, o_ref, *scratch, use_relu, do_layer_norm,
                 n_valid, n_padded, num_k, acc_in_out, matmul_dtype):
    """y = x @ w accumulated over the K grid axis; LayerNorm (+ReLU) epilogue."""

    def epilogue(y):
        # y: [tm, D_out_p] f32.  Padded columns (>= n_valid) are exactly zero
        # because the corresponding weight columns are zero-padded, so no mask
        # is needed -- only a scalar correction of the sum of squares below.
        if do_layer_norm:
            inv_n = 1.0 / float(n_valid)
            mean = jnp.sum(y, axis=-1, keepdims=True) * inv_n
            d = y - mean                                   # padded cols become -mean
            s2 = jnp.sum(d * d, axis=-1, keepdims=True)
            n_pad = n_padded - n_valid
            if n_pad:
                s2 = s2 - float(n_pad) * (mean * mean)     # drop padded-col contribution
            var = jnp.maximum(s2 * inv_n, 0.0)
            y = d * jax.lax.rsqrt(var + LN_EPS)
            y = y * gb_ref[0:1, :] + gb_ref[1:2, :]        # gamma, beta (zero on padded cols)
        if use_relu:
            y = jnp.maximum(y, 0.0)
        return y

    part = jnp.dot(x_ref[...].astype(matmul_dtype), w_ref[...],
                   preferred_element_type=jnp.float32)

    if num_k == 1:
        # Whole-K fast path: no accumulator store/reload at all.
        o_ref[...] = epilogue(part).astype(o_ref.dtype)
        return

    acc_ref = o_ref if acc_in_out else scratch[0]
    k = pl.program_id(1)

    @pl.when(k == 0)
    def _first():                      # write-on-first-step: no zero init + RMW
        acc_ref[...] = part

    @pl.when(k != 0)
    def _accumulate():
        acc_ref[...] += part

    @pl.when(k == num_k - 1)
    def _finalize():
        o_ref[...] = epilogue(acc_ref[...].astype(jnp.float32)).astype(o_ref.dtype)


def projection_layer(x, w, gamma=None, beta=None, *, activation="relu",
                     do_layer_norm=True, matmul_dtype=jnp.bfloat16,
                     tm=None, tk=None, out_dtype=None):
    """x: [B, D_in], w: [D_in, D_out], gamma/beta: [D_out] -> [B, D_out]."""
    B, D_in = x.shape
    D_in_w, D_out = w.shape
    assert D_in == D_in_w

    out_dtype = jnp.dtype(out_dtype if out_dtype is not None else x.dtype)
    matmul_dtype = jnp.dtype(matmul_dtype)
    use_relu = activation == "relu"
    # TODO(synk): only 'relu' / None from ACT2FN are implemented; other
    # activation_fn strings fall through as identity.

    mm_bytes = matmul_dtype.itemsize
    out_bytes = out_dtype.itemsize
    x_bytes = jnp.dtype(x.dtype).itemsize
    sub = 16 if mm_bytes < 4 else 8          # sublane granularity for packed dtypes

    D_in_p = _round_up(D_in, 128)
    D_out_p = _round_up(D_out, 128)

    # --- generation-aware VMEM budgets (v5e/v6e: 128 MiB; v7x: 64 MiB + 2 TC/chip).
    vmem_cap = 64 << 20
    try:
        vmem_cap = int(getattr(pltpu.get_tpu_info(), "vmem_capacity_bytes", vmem_cap))
    except Exception:
        pass
    if vmem_cap >= (100 << 20):              # v5e / v6e
        tile_budget, vmem_limit_cap, multi_tc = 48 << 20, 96 << 20, False
    else:                                    # v7x
        tile_budget, vmem_limit_cap, multi_tc = 24 << 20, 48 << 20, True

    # --- tk: whole-K (weight DMA'd once, VMEM-resident) whenever the
    #     single-buffered weight fits ~2/3 of the budget; else the largest
    #     128-multiple divisor of padded K whose double-buffered tile fits.
    if tk is None:
        if D_in_p * D_out_p * mm_bytes <= (2 * tile_budget) // 3:
            tk = D_in_p
        else:
            tk = 128
            for cand in range(D_in_p - 128, 127, -128):
                if D_in_p % cand == 0 and 2 * cand * D_out_p * mm_bytes <= (2 * tile_budget) // 3:
                    tk = cand
                    break
    assert D_in_p % tk == 0
    num_k = D_in_p // tk
    whole_k = num_k == 1

    # Single-buffer the K-invariant weight (and gamma/beta) when it is big
    # enough for the reclaimed pipeline buffer to matter.
    w_single_buffer = whole_k and (D_in_p * D_out_p * mm_bytes >= (1 << 20))
    w_bufs = 1 if w_single_buffer else 2

    acc_in_out = out_dtype == jnp.float32    # accumulator lives in the output block

    # --- tm: size the row tile so the last row block is nearly full (instead
    #     of always padding B up to a 256 multiple); on v7x guarantee >= 2 row
    #     blocks so the 'parallel' axis feeds both TensorCores.
    if tm is None:
        n_blk = pl.cdiv(B, 256)
        if multi_tc and n_blk < 2 and B > sub:
            n_blk = 2
        tm = min(256, _round_up(pl.cdiv(B, n_blk), sub))
    tm = max(sub, _round_up(tm, sub))

    def _footprint(tm_):
        need_acc = (num_k > 1) and not acc_in_out
        return (2 * tm_ * tk * max(x_bytes, mm_bytes)   # x tile (double-buffered)
                + w_bufs * tk * D_out_p * mm_bytes      # weight tile
                + 2 * 2 * D_out_p * 4                   # gamma/beta
                + 2 * tm_ * D_out_p * out_bytes         # output tile
                + (tm_ * D_out_p * 4 if need_acc else 0))

    while tm > sub and _footprint(tm) > tile_budget:
        tm = max(sub, _round_up(tm // 2, sub))
    # TODO(synk): for very large D_out_p even tm == sub can exceed the budget;
    # an N-tiled two-pass LayerNorm fallback would be needed to degrade gracefully.

    B_p = _round_up(B, tm)

    # --- operands: feed x as-is (cast in-kernel) when already aligned, avoiding
    #     a wrapper-side pad+cast HBM round trip; otherwise pad+cast once.
    if B_p == B and D_in_p == D_in:
        xp = x
    else:
        xp = jnp.zeros((B_p, D_in_p), matmul_dtype).at[:B, :D_in].set(x.astype(matmul_dtype))

    if w.shape == (D_in_p, D_out_p) and w.dtype == matmul_dtype:
        wp = w
    else:
        wp = jnp.zeros((D_in_p, D_out_p), matmul_dtype).at[:D_in, :D_out].set(
            w.astype(matmul_dtype))

    if gamma is None:
        gamma = jnp.ones((D_out,), jnp.float32)
    if beta is None:
        beta = jnp.zeros((D_out,), jnp.float32)
    gb = jnp.zeros((2, D_out_p), jnp.float32)
    gb = gb.at[0, :D_out].set(gamma.astype(jnp.float32))
    gb = gb.at[1, :D_out].set(beta.astype(jnp.float32))

    grid = (B_p // tm, num_k)

    const_kwargs = dict(pipeline_mode=pl.Buffered(1)) if w_single_buffer else {}
    in_specs = [
        pl.BlockSpec((tm, tk), lambda i, k: (i, k)),                       # x tile
        pl.BlockSpec((tk, D_out_p), lambda i, k: (k, 0), **const_kwargs),  # w tile (full N)
        pl.BlockSpec((2, D_out_p), lambda i, k: (0, 0), **const_kwargs),   # gamma/beta
    ]
    # TODO(synk): for narrow D_out_p with many row blocks, sweeping
    # pipeline_mode=pl.Buffered(3) on the x spec can hide exposed x DMA.

    need_acc_scratch = (num_k > 1) and not acc_in_out
    scratch_shapes = [pltpu.VMEM((tm, D_out_p), jnp.float32)] if need_acc_scratch else []

    vmem_limit = min(max(int(_footprint(tm) * 1.25) + (2 << 20), 16 << 20), vmem_limit_cap)

    kernel = functools.partial(
        _proj_kernel, use_relu=use_relu, do_layer_norm=do_layer_norm,
        n_valid=D_out, n_padded=D_out_p, num_k=num_k, acc_in_out=acc_in_out,
        matmul_dtype=matmul_dtype)

    out = pl.pallas_call(
        kernel,
        out_shape=jax.ShapeDtypeStruct((B_p, D_out_p), out_dtype),
        grid=grid,
        in_specs=in_specs,
        out_specs=pl.BlockSpec((tm, D_out_p), lambda i, k: (i, 0)),
        scratch_shapes=scratch_shapes,
        compiler_params=pltpu.CompilerParams(
            dimension_semantics=("parallel", "arbitrary"),
            vmem_limit_bytes=vmem_limit,
        ),
    )(xp, wp, gb)

    return out[:B, :D_out]


def _reference(x, w, gamma, beta, matmul_dtype=jnp.bfloat16, use_relu=True):
    # Mirrors the kernel's dtype policy: bf16 operands, f32 accumulation & LN.
    y = jnp.dot(x.astype(matmul_dtype), w.astype(matmul_dtype),
                preferred_element_type=jnp.float32)
    mean = jnp.mean(y, axis=-1, keepdims=True)
    var = jnp.mean((y - mean) ** 2, axis=-1, keepdims=True)
    y = (y - mean) * jax.lax.rsqrt(var + LN_EPS)
    y = y * gamma + beta
    if use_relu:
        y = jnp.maximum(y, 0.0)
    return y


if __name__ == "__main__":
    key = jax.random.PRNGKey(0)
    kx, kw, kx2, kw2 = jax.random.split(key, 4)

    # Case 1: shapes consistent with the module (batch=8, input_size=32,
    # output_size=128); parameters initialized like _init_weights().
    B, D_in, D_out = 8, 32, 128
    x = jax.random.normal(kx, (B, D_in), dtype=jnp.float32)
    w_pt = jax.random.normal(kw, (D_out, D_in), dtype=jnp.float32) * (D_in ** -0.5)
    w = w_pt.T                                   # [D_in, D_out] for the x @ w layout
    gamma = jnp.ones((D_out,), dtype=jnp.float32)
    beta = jnp.zeros((D_out,), dtype=jnp.float32)

    out = jax.block_until_ready(projection_layer(x, w, gamma, beta, activation="relu"))
    assert out.shape == (B, D_out)
    ref = _reference(x, w, gamma, beta)
    assert jnp.allclose(out, ref, atol=2e-3, rtol=2e-3), "mismatch vs bf16 reference"
    ref_f32 = _reference(x, w, gamma, beta, matmul_dtype=jnp.float32)
    assert jnp.allclose(out, ref_f32, atol=6e-2, rtol=6e-2), "mismatch vs f32 reference"

    # Case 2: ragged shapes (row padding + padded-D_out LayerNorm correction path).
    B2, D_in2, D_out2 = 10, 32, 96
    x2 = jax.random.normal(kx2, (B2, D_in2), dtype=jnp.float32)
    w2 = (jax.random.normal(kw2, (D_out2, D_in2), dtype=jnp.float32) * (D_in2 ** -0.5)).T
    gamma2 = jnp.ones((D_out2,), dtype=jnp.float32)
    beta2 = jnp.zeros((D_out2,), dtype=jnp.float32)
    out2 = jax.block_until_ready(projection_layer(x2, w2, gamma2, beta2, activation="relu"))
    assert out2.shape == (B2, D_out2)
    ref2 = _reference(x2, w2, gamma2, beta2)
    assert jnp.allclose(out2, ref2, atol=2e-3, rtol=2e-3), "mismatch vs bf16 reference (ragged)"

    print("KERNEL_OK")
</pallas_src>

<mosaic_0001>
module attributes {stable_mosaic.version = 11 : i64} {
  func.func @_proj_kernel(%arg0: i32, %arg1: i32, %arg2: memref<16x128xbf16, #tpu.memory_space<vmem>>, %arg3: memref<128x128xbf16, #tpu.memory_space<vmem>>, %arg4: memref<2x128xf32, #tpu.memory_space<vmem>>, %arg5: memref<16x128xf32, #tpu.memory_space<vmem>>) attributes {dimension_semantics = [#tpu.dimension_semantics<parallel>, #tpu.dimension_semantics<arbitrary>], iteration_bounds = array<i64: 1, 1>, scalar_prefetch = 0 : i64, scratch_operands = 0 : i64, tpu.core_type = #tpu.core_type<tc>, window_params = [{transform_indices = @transform_0, window_bounds = array<i64: 16, 128>}, {transform_indices = @transform_1, window_bounds = array<i64: 128, 128>}, {pipeline_mode = #tpu.pipeline_mode<synchronous>, transform_indices = @transform_2, window_bounds = array<i64: 2, 128>}, {transform_indices = @transform_3, window_bounds = array<i64: 16, 128>}]} {
    %c0 = arith.constant 0 : index
    %c0_0 = arith.constant 0 : index
    %0 = vector.load %arg2[%c0, %c0_0] : memref<16x128xbf16, #tpu.memory_space<vmem>>, vector<16x128xbf16>
    %c0_1 = arith.constant 0 : index
    %c0_2 = arith.constant 0 : index
    %1 = vector.load %arg3[%c0_1, %c0_2] : memref<128x128xbf16, #tpu.memory_space<vmem>>, vector<128x128xbf16>
    %cst = arith.constant dense<0.000000e+00> : vector<16x128xf32>
    %2 = tpu.matmul %0, %1, %cst {dimension_numbers = #tpu.dot_dimension_numbers<[1], [0], [0], [1], [0, 0, 1, 1], [], []>} : vector<16x128xbf16>, vector<128x128xbf16>, vector<16x128xf32> -> vector<16x128xf32>
    %cst_3 = arith.constant dense<0.000000e+00> : vector<16xf32>
    %3 = vector.multi_reduction <add>, %2, %cst_3 [1] : vector<16x128xf32> to vector<16xf32>
    %4 = vector.shape_cast %3 : vector<16xf32> to vector<16x1xf32>
    %cst_4 = arith.constant 7.812500e-03 : f32
    %5 = vector.broadcast %cst_4 : f32 to vector<16x1xf32>
    %6 = arith.mulf %4, %5 : vector<16x1xf32>
    %7 = vector.broadcast %6 : vector<16x1xf32> to vector<16x128xf32>
    %8 = arith.subf %2, %7 : vector<16x128xf32>
    %9 = arith.mulf %8, %8 : vector<16x128xf32>
    %cst_5 = arith.constant dense<0.000000e+00> : vector<16xf32>
    %10 = vector.multi_reduction <add>, %9, %cst_5 [1] : vector<16x128xf32> to vector<16xf32>
    %11 = vector.shape_cast %10 : vector<16xf32> to vector<16x1xf32>
    %cst_6 = arith.constant 7.812500e-03 : f32
    %12 = vector.broadcast %cst_6 : f32 to vector<16x1xf32>
    %13 = arith.mulf %11, %12 : vector<16x1xf32>
    %cst_7 = arith.constant 0.000000e+00 : f32
    %14 = vector.broadcast %cst_7 : f32 to vector<16x1xf32>
    %15 = arith.maximumf %13, %14 : vector<16x1xf32>
    %cst_8 = arith.constant 9.99999974E-6 : f32
    %16 = vector.broadcast %cst_8 : f32 to vector<16x1xf32>
    %17 = arith.addf %15, %16 : vector<16x1xf32>
    %18 = math.rsqrt %17 : vector<16x1xf32>
    %19 = vector.broadcast %18 : vector<16x1xf32> to vector<16x128xf32>
    %20 = arith.mulf %8, %19 : vector<16x128xf32>
    %c0_9 = arith.constant 0 : index
    %c0_10 = arith.constant 0 : index
    %21 = vector.load %arg4[%c0_9, %c0_10] : memref<2x128xf32, #tpu.memory_space<vmem>>, vector<1x128xf32>
    %22 = vector.broadcast %21 : vector<1x128xf32> to vector<16x128xf32>
    %23 = arith.mulf %20, %22 : vector<16x128xf32>
    %c1 = arith.constant 1 : index
    %c0_11 = arith.constant 0 : index
    %24 = vector.load %arg4[%c1, %c0_11] : memref<2x128xf32, #tpu.memory_space<vmem>>, vector<1x128xf32>
    %25 = vector.broadcast %24 : vector<1x128xf32> to vector<16x128xf32>
    %26 = arith.addf %23, %25 : vector<16x128xf32>
    %cst_12 = arith.constant 0.000000e+00 : f32
    %27 = vector.broadcast %cst_12 : f32 to vector<16x128xf32>
    %28 = arith.maximumf %26, %27 : vector<16x128xf32>
    %c0_13 = arith.constant 0 : index
    %c0_14 = arith.constant 0 : index
    %29 = vector.load %arg5[%c0_13, %c0_14] : memref<16x128xf32, #tpu.memory_space<vmem>>, vector<16x128xf32>
    tpu.vector_store %arg5[%c0_13, %c0_14], %28 {strides = array<i32>} : memref<16x128xf32, #tpu.memory_space<vmem>>, vector<16x128xf32>,
    return
  }
  func.func @transform_0(%arg0: i32, %arg1: i32) -> (i32, i32) {
    %c0_i32 = arith.constant 0 : i32
    return %arg0, %arg1 : i32, i32
  }
  func.func @transform_1(%arg0: i32, %arg1: i32) -> (i32, i32) {
    %c0_i32 = arith.constant 0 : i32
    %c0_i32_0 = arith.constant 0 : i32
    return %arg1, %c0_i32 : i32, i32
  }
  func.func @transform_2(%arg0: i32, %arg1: i32) -> (i32, i32) {
    %c0_i32 = arith.constant 0 : i32
    %c0_i32_0 = arith.constant 0 : i32
    %c0_i32_1 = arith.constant 0 : i32
    return %c0_i32, %c0_i32_0 : i32, i32
  }
  func.func @transform_3(%arg0: i32, %arg1: i32) -> (i32, i32) {
    %c0_i32 = arith.constant 0 : i32
    %c0_i32_0 = arith.constant 0 : i32
    return %arg0, %c0_i32 : i32, i32
  }
}

</mosaic_0001>

<llo_original>
// kernel: tpu_custom_call.1
$region0: #{tpu_custom_call.1}
  #allocation0 [shape = 'u32[]', space=smem, size = 0x4, offset = 0x4, fixed_abs, tag = 'smem constant byte address 0x4 - core index']
  #allocation1 [shape = 'u32[144,128]{1,0:T(1,128)}', space=vmem, size = 0x12000, scoped, tag = 'internal scratch']
  %s0 = inlined_call_operand.hbm [shape: bf16[16,128], index: 0, kind: input, shape index: {}]
  %s1 = inlined_call_operand.hbm [shape: bf16[128,128], index: 1, kind: input, shape index: {}]
  %s2 = inlined_call_operand.vmem [shape: f32[2,128], index: 2, kind: input, shape index: {}]
  %s3 = inlined_call_operand.hbm [shape: f32[16,128], index: 3, kind: output, shape index: {}]
  %s4 = sld [smem:[#allocation0]]
  $region30: #{tpu_custom_call.1} parent=0
    _
  %s6 = ssub.s32 1, %s4
  %s7 = scalar_select 0, %s6, %s4
  $region1: #{tpu_custom_call.1} parent=0
    #allocation2 [shape = 'u8[4096]{0}', space=vmem, size = 0x1000, scoped, tag = 'input window, operand 0, single buffered']
    #allocation3 [shape = 's32[1]{0}', space=sflag, size = 0x4, scoped, tag = 'scoped memory for tpu_custom_call.1']
    #allocation4 [shape = 's32[1]{0}', space=sflag, size = 0x4, scoped, tag = 'scoped memory for tpu_custom_call.1']
    #allocation5 [shape = 'u8[32768]{0}', space=vmem, size = 0x8000, scoped, tag = 'input window, operand 1, single buffered']
    #allocation6 [shape = 's32[1]{0}', space=sflag, size = 0x4, scoped, tag = 'scoped memory for tpu_custom_call.1']
    #allocation7 [shape = 'u8[8192]{0}', space=vmem, size = 0x2000, scoped, tag = 'output window, operand 0, single buffered']
    %8 = vsyncpa [#allocation3], 0
    %9 = vsyncpa [#allocation6], 0
    %10 = vsyncpa [#allocation4], 0
    // Predicated region
    $region2: #{tpu_custom_call.1} parent=1 // pred_check
      _
    $region3: #{tpu_custom_call.1} parent=1 // pred_check_branch
      %12 = sbr.rel (0) target = $region5
    $region4: #{tpu_custom_call.1} parent=1 // pred_region
      %s14 = ssub.s32 128, 128
      %15 = vsyncadd [#allocation3], %s14
      %s16 = sshll.u32 [#allocation2], 4
      %s17 = int_to_ptr.vmem [resolvable:$true] %s16
      %22 = dma.hbm_to_vmem [thread:$0]  %s0, 128, %s17, [#allocation3], 64, 64, 4
    $region5: #{tpu_custom_call.1} parent=1 // pred_fallthru
      _
    // Predicated region
    $region6: #{tpu_custom_call.1} parent=1 // pred_check
      _
    $region7: #{tpu_custom_call.1} parent=1 // pred_check_branch
      %24 = sbr.rel (0) target = $region9
    $region8: #{tpu_custom_call.1} parent=1 // pred_region
      %s26 = ssub.s32 1024, 1024
      %27 = vsyncadd [#allocation6], %s26
      %s28 = sshll.u32 [#allocation5], 4
      %s29 = int_to_ptr.vmem [resolvable:$true] %s28
      %34 = dma.hbm_to_vmem [thread:$0]  %s1, 1024, %s29, [#allocation6], 64, 64, 4
    $region9: #{tpu_custom_call.1} parent=1 // pred_fallthru
      _
    // Predicated region
    $region10: #{tpu_custom_call.1} parent=1 // pred_check
      _
    $region11: #{tpu_custom_call.1} parent=1 // pred_check_branch
      %36 = sbr.rel (0) target = $region13
    $region12: #{tpu_custom_call.1} parent=1 // pred_region
      _
    $region13: #{tpu_custom_call.1} parent=1 // pred_fallthru
      _
    // Predicated region
    $region14: #{tpu_custom_call.1} parent=1 // pred_check
      _
    $region15: #{tpu_custom_call.1} parent=1 // pred_check_branch
      %38 = sbr.rel (0) target = $region17
    $region16: #{tpu_custom_call.1} parent=1 // pred_region
      %39 = dma.done [#allocation3], 128
    $region17: #{tpu_custom_call.1} parent=1 // pred_fallthru
      _
    // Predicated region
    $region18: #{tpu_custom_call.1} parent=1 // pred_check
      _
    $region19: #{tpu_custom_call.1} parent=1 // pred_check_branch
      %41 = sbr.rel (0) target = $region21
    $region20: #{tpu_custom_call.1} parent=1 // pred_region
      %42 = dma.done [#allocation6], 1024
    $region21: #{tpu_custom_call.1} parent=1 // pred_fallthru
      _
    %v44 = vld [vmem:[#allocation2] sm:$0xf]
    %v45 = vld [vmem:[#allocation2 + $0x4] sm:$0xf]
    %v46 = vld [vmem:[#allocation5] sm:$0xf]
    %v47 = vld [vmem:[#allocation5 + $0x4] sm:$0xf]
    %v48 = vld [vmem:[#allocation5 + $0x8] sm:$0xf]
    %v49 = vld [vmem:[#allocation5 + $0xc] sm:$0xf]
    %v50 = vld [vmem:[#allocation5 + $0x10] sm:$0xf]
    %v51 = vld [vmem:[#allocation5 + $0x14] sm:$0xf]
    %v52 = vld [vmem:[#allocation5 + $0x18] sm:$0xf]
    %v53 = vld [vmem:[#allocation5 + $0x1c] sm:$0xf]
    %v54 = vld [vmem:[#allocation5 + $0x20] sm:$0xf]
    %v55 = vld [vmem:[#allocation5 + $0x24] sm:$0xf]
    %v56 = vld [vmem:[#allocation5 + $0x28] sm:$0xf]
    %v57 = vld [vmem:[#allocation5 + $0x2c] sm:$0xf]
    %v58 = vld [vmem:[#allocation5 + $0x30] sm:$0xf]
    %v59 = vld [vmem:[#allocation5 + $0x34] sm:$0xf]
    %v60 = vld [vmem:[#allocation5 + $0x38] sm:$0xf]
    %v61 = vld [vmem:[#allocation5 + $0x3c] sm:$0xf]
    %v64 = vunpack.c.l.b16 %v44
    %v65 = vunpack.c.l.b16 %v45
    %v66 = vpack.c.b16 %v65, %v64
    %v84 = vunpack.c.l.b16 %v46
    %v85 = vunpack.c.l.b16 %v47
    %v86 = vunpack.c.l.b16 %v48
    %v87 = vunpack.c.l.b16 %v49
    %v88 = vunpack.c.l.b16 %v50
    %v89 = vunpack.c.l.b16 %v51
    %v90 = vunpack.c.l.b16 %v52
    %v91 = vunpack.c.l.b16 %v53
    %v92 = vunpack.c.l.b16 %v54
    %v93 = vunpack.c.l.b16 %v55
    %v94 = vunpack.c.l.b16 %v56
    %v95 = vunpack.c.l.b16 %v57
    %v96 = vunpack.c.l.b16 %v58
    %v97 = vunpack.c.l.b16 %v59
    %v98 = vunpack.c.l.b16 %v60
    %v99 = vunpack.c.l.b16 %v61
    %v100 = vpack.c.b16 %v85, %v84
    %v101 = vpack.c.b16 %v87, %v86
    %v102 = vpack.c.b16 %v89, %v88
    %v103 = vpack.c.b16 %v91, %v90
    %v104 = vpack.c.b16 %v93, %v92
    %v105 = vpack.c.b16 %v95, %v94
    %v106 = vpack.c.b16 %v97, %v96
    %v107 = vpack.c.b16 %v99, %v98
    %116 = vmatprep.subr.bf16.mxu0 0
    %117 = vmatpush1.bf16.msra.mxu0 %v100
    %118 = vmatprep.subr.bf16.mxu0 0
    %119 = vmatpush1.bf16.msra.mxu0 %v101
    %120 = vmatprep.subr.bf16.mxu0 0
    %121 = vmatpush1.bf16.msra.mxu0 %v102
    %122 = vmatprep.subr.bf16.mxu0 0
    %123 = vmatpush1.bf16.msra.mxu0 %v103
    %124 = vmatprep.subr.bf16.mxu0 0
    %125 = vmatpush1.bf16.msra.mxu0 %v104
    %126 = vmatprep.subr.bf16.mxu0 0
    %127 = vmatpush1.bf16.msra.mxu0 %v105
    %128 = vmatprep.subr.bf16.mxu0 0
    %129 = vmatpush1.bf16.msra.mxu0 %v106
    %130 = vmatprep.subr.bf16.mxu0 0
    %131 = vmatpush1.bf16.msra.mxu0 %v107
    %132 = vmatprep.subr.bf16.mxu0 0
    %133 = vmatpush1.bf16.msra.mxu0 0
    %134 = vmatprep.subr.bf16.mxu0 0
    %135 = vmatpush1.bf16.msra.mxu0 0
    %136 = vmatprep.subr.bf16.mxu0 0
    %137 = vmatpush1.bf16.msra.mxu0 0
    %138 = vmatprep.subr.bf16.mxu0 0
    %139 = vmatpush1.bf16.msra.mxu0 0
    %140 = vmatprep.subr.bf16.mxu0 0
    %141 = vmatpush1.bf16.msra.mxu0 0
    %142 = vmatprep.subr.bf16.mxu0 0
    %143 = vmatpush1.bf16.msra.mxu0 0
    %144 = vmatprep.subr.bf16.mxu0 0
    %145 = vmatpush1.bf16.msra.mxu0 0
    %146 = vmatprep.subr.bf16.mxu0 0
    %147 = vmatpush1.bf16.msra.mxu0 0
    %148 = vmatprep.mubr.bf16.mxu0 0
    %149 = vmatmul.mubr.bf16.gmra.mrb[0].mxu0 %v66
    %v150 = vpop.f32.mrb[0].mxu0
    %v151 = vadd.f32 0.0, %v150
    %v152 = vpop.f32.mrb[0].mxu0
    %v153 = vpop.f32.mrb[0].mxu0
    %v154 = vadd.f32 0.0, %v153
    %v155 = vpop.f32.mrb[0].mxu0
    %156 = vdwg.mxu0
    %157 = vadd.xlane.f32.xlu0 %v151
    %v158 = vpop.xlane.xlu0 %157
    %159 = vadd.xlane.f32.xlu0 %v154
    %v160 = vpop.xlane.xlu0 %159
    %v161 = vmul.f32 %v158, 0.0078125
    %v162 = vmul.f32 %v160, 0.0078125
    %v163 = vsub.f32 %v151, %v161
    %v164 = vsub.f32 %v154, %v162
    %v165 = vmul.f32 %v163, %v163
    %v166 = vmul.f32 %v164, %v164
    %167 = vadd.xlane.f32.xlu0 %v165
    %v168 = vpop.xlane.xlu0 %167
    %169 = vadd.xlane.f32.xlu0 %v166
    %v170 = vpop.xlane.xlu0 %169
    %v171 = vmul.f32 %v168, 0.0078125
    %v172 = vmul.f32 %v170, 0.0078125
    %v173 = vmax.f32 %v171, 0.0
    %v174 = vmax.f32 %v172, 0.0
    %v175 = vadd.f32 %v173, 1e-05
    %v176 = vadd.f32 %v174, 1e-05
    %v177 = vrsqrt.pop %v175
    %v178 = vrsqrt.pop %v176
    %v179 = vmul.f32 %v163, %v177
    %v180 = vmul.f32 %v164, %v178
    %v181 = vld [vmem:[%s2] sm:$0x1]
    %v182 = vlaneseq
    %v183 = vshrl.u32 %v182, 7
    %v184 = vsub.s32 0, %v183
    %v185 = vrot.slane %v181, %v184
    %v186 = vmul.f32 %v179, %v185
    %v187 = vmul.f32 %v180, %v185
    %v188 = vld [vmem:[%s2 + $0x1] sm:$0x1]
    %v189 = vlaneseq
    %v190 = vshrl.u32 %v189, 7
    %v191 = vsub.s32 0, %v190
    %v192 = vrot.slane %v188, %v191
    %v193 = vadd.f32 %v186, %v192
    %v194 = vadd.f32 %v187, %v192
    %v195 = vmax.f32 %v193, 0.0
    %v196 = vmax.f32 %v194, 0.0
    %197 = vst [vmem:[#allocation7] sm:$0xff] %v195
    %198 = vst [vmem:[#allocation7 + $0x8] sm:$0xff] %v196
    // Predicated region
    $region22: #{tpu_custom_call.1} parent=1 // pred_check
      _
    $region23: #{tpu_custom_call.1} parent=1 // pred_check_branch
      %200 = sbr.rel (0) target = $region25
    $region24: #{tpu_custom_call.1} parent=1 // pred_region
      %s202 = ssub.s32 256, 256
      %203 = vsyncadd [#allocation4], %s202
      %s204 = sshll.u32 [#allocation7], 4
      %s205 = int_to_ptr.vmem [resolvable:$true] %s204
      %210 = dma.vmem_to_hbm [thread:$0]  %s205, 256, %s3, [#allocation4], 128, 128, 8
    $region25: #{tpu_custom_call.1} parent=1 // pred_fallthru
      _
    // Predicated region
    $region26: #{tpu_custom_call.1} parent=1 // pred_check
      _
    $region27: #{tpu_custom_call.1} parent=1 // pred_check_branch
      %212 = sbr.rel (0) target = $region29
    $region28: #{tpu_custom_call.1} parent=1 // pred_region
      %213 = dma.done [#allocation4], 256
    $region29: #{tpu_custom_call.1} parent=1 // pred_fallthru
      _
    %214 = vsyncpa [#allocation3], 1
    %215 = vsyncpa [#allocation6], 1
    %216 = vsyncpa [#allocation4], 1

</llo_original>
